<compile_context>
chip_gen: v7x
topology: tpu7x:2x2x1
jax: 0.10.0
libtpu: 0.0.40
codegen_flags: <defaults>
</compile_context>

<pallas_src>
import functools

import jax
import jax.numpy as jnp
from jax.experimental import pallas as pl
from jax.experimental.pallas import tpu as pltpu

LANES = 512          # lane-dense last dim (multiple of 128)
MAX_BLOCK_ROWS = 512 # >=512 rows per tile reaches ~85% of HBM roofline


def _round_up(x, m):
    return ((x + m - 1) // m) * m


def _mish_kernel(x_ref, o_ref):
    x = x_ref[...]
    # Numerically stable softplus: max(x,0) + log(1 + exp(-|x|))
    sp = jnp.maximum(x, 0.0) + jnp.log(1.0 + jnp.exp(-jnp.abs(x)))
    o_ref[...] = x * jnp.tanh(sp)


@functools.partial(jax.jit, static_argnames=())
def mish(x):
    """Elementwise mish for any input shape/dtype, computed in f32 on TPU."""
    orig_shape = x.shape
    orig_dtype = x.dtype

    flat = x.reshape(-1).astype(jnp.float32)
    n = flat.shape[0]

    rows = pl.cdiv(n, LANES)
    # Block rows: multiple of 8 (sublane), capped for VMEM headroom.
    block_rows = min(MAX_BLOCK_ROWS, _round_up(max(rows, 1), 8))
    rows_p = _round_up(max(rows, 1), block_rows)

    padded = jnp.pad(flat, (0, rows_p * LANES - n))
    x2d = padded.reshape(rows_p, LANES)

    grid = (rows_p // block_rows,)
    out2d = pl.pallas_call(
        _mish_kernel,
        out_shape=jax.ShapeDtypeStruct((rows_p, LANES), jnp.float32),
        grid=grid,
        in_specs=[pl.BlockSpec((block_rows, LANES), lambda i: (i, 0))],
        out_specs=pl.BlockSpec((block_rows, LANES), lambda i: (i, 0)),
        compiler_params=pltpu.CompilerParams(
            dimension_semantics=("parallel",),
        ),
    )(x2d)

    return out2d.reshape(-1)[:n].reshape(orig_shape).astype(orig_dtype)


def _mish_reference(x):
    xf = x.astype(jnp.float32)
    return (xf * jnp.tanh(jax.nn.softplus(xf))).astype(x.dtype)


if __name__ == "__main__":
    key = jax.random.PRNGKey(0)
    # Small deterministic input; mish is shape-agnostic elementwise.
    x = jax.random.normal(key, (2, 4, 16, 16), jnp.float32) * 4.0

    out = mish(x)
    out = jax.block_until_ready(out)

    ref = _mish_reference(x)
    assert out.shape == x.shape, out.shape
    assert bool(jnp.all(jnp.isfinite(out)))
    assert bool(jnp.allclose(out, ref, atol=1e-5, rtol=1e-5)), (
        float(jnp.max(jnp.abs(out - ref)))
    )
    print("KERNEL_OK")
</pallas_src>

<mosaic_0001>
module attributes {stable_mosaic.version = 11 : i64} {
  func.func @_mish_kernel(%arg0: i32, %arg1: memref<8x512xf32, #tpu.memory_space<vmem>>, %arg2: memref<8x512xf32, #tpu.memory_space<vmem>>) attributes {dimension_semantics = [#tpu.dimension_semantics<parallel>], iteration_bounds = array<i64: 1>, scalar_prefetch = 0 : i64, scratch_operands = 0 : i64, tpu.core_type = #tpu.core_type<tc>, window_params = [{transform_indices = @transform_0, window_bounds = array<i64: 8, 512>}, {transform_indices = @transform_1, window_bounds = array<i64: 8, 512>}]} {
    %c0 = arith.constant 0 : index
    %c0_0 = arith.constant 0 : index
    %0 = vector.load %arg1[%c0, %c0_0] : memref<8x512xf32, #tpu.memory_space<vmem>>, vector<8x512xf32>
    %cst = arith.constant 0.000000e+00 : f32
    %1 = vector.broadcast %cst : f32 to vector<8x512xf32>
    %2 = arith.maximumf %0, %1 : vector<8x512xf32>
    %3 = math.absf %0 : vector<8x512xf32>
    %cst_1 = arith.constant 0.000000e+00 : f32
    %4 = vector.broadcast %cst_1 : f32 to vector<8x512xf32>
    %5 = arith.subf %4, %3 : vector<8x512xf32>
    %6 = math.exp %5 : vector<8x512xf32>
    %cst_2 = arith.constant 1.000000e+00 : f32
    %7 = vector.broadcast %cst_2 : f32 to vector<8x512xf32>
    %8 = arith.addf %7, %6 : vector<8x512xf32>
    %9 = math.log %8 : vector<8x512xf32>
    %10 = arith.addf %2, %9 : vector<8x512xf32>
    %11 = math.tanh %10 : vector<8x512xf32>
    %12 = arith.mulf %0, %11 : vector<8x512xf32>
    %c0_3 = arith.constant 0 : index
    %c0_4 = arith.constant 0 : index
    %13 = vector.load %arg2[%c0_3, %c0_4] : memref<8x512xf32, #tpu.memory_space<vmem>>, vector<8x512xf32>
    tpu.vector_store %arg2[%c0_3, %c0_4], %12 {strides = array<i32>} : memref<8x512xf32, #tpu.memory_space<vmem>>, vector<8x512xf32>,
    return
  }
  func.func @transform_0(%arg0: i32) -> (i32, i32) {
    %c0_i32 = arith.constant 0 : i32
    %c0_i32_0 = arith.constant 0 : i32
    return %arg0, %c0_i32 : i32, i32
  }
  func.func @transform_1(%arg0: i32) -> (i32, i32) {
    %c0_i32 = arith.constant 0 : i32
    %c0_i32_0 = arith.constant 0 : i32
    return %arg0, %c0_i32 : i32, i32
  }
}

</mosaic_0001>

<llo_original>
// kernel: mish.1
$region0: #{mish.1}
  #allocation0 [shape = 'u32[]', space=smem, size = 0x4, offset = 0x4, fixed_abs, tag = 'smem constant byte address 0x4 - core index']
  #allocation1 [shape = 'u32[144,128]{1,0:T(1,128)}', space=vmem, size = 0x12000, scoped, tag = 'internal scratch']
  %s0 = inlined_call_operand.vmem [shape: f32[8,512], index: 0, kind: input, shape index: {}]
  %s1 = inlined_call_operand.vmem [shape: f32[8,512], index: 1, kind: output, shape index: {}]
  %s2 = sld [smem:[#allocation0]]
  $region14: #{mish.1} parent=0
    _
  %s4 = ssub.s32 1, %s2
  %s5 = scalar_select 0, %s4, %s2
  // Predicated region
  $region2: #{mish.1} parent=0 // pred_check
    _
  $region3: #{mish.1} parent=0 // pred_check_branch
    %7 = sbr.rel (0) target = $region5
  $region4: #{mish.1} parent=0 // pred_region
    _
  $region5: #{mish.1} parent=0 // pred_fallthru
    _
  %v8 = vld [vmem:[%s0] sm:$0xff]
  %v9 = vld [vmem:[%s0 + $0x8] sm:$0xff]
  %v10 = vld [vmem:[%s0 + $0x10] sm:$0xff]
  %v11 = vld [vmem:[%s0 + $0x18] sm:$0xff]
  %v12 = vmax.f32 %v8, 0.0
  %v13 = vmax.f32 %v9, 0.0
  %v14 = vmax.f32 %v10, 0.0
  %v15 = vmax.f32 %v11, 0.0
  %v16 = vand.u32 2147483647, %v8
  %v17 = vand.u32 2147483647, %v9
  %v18 = vand.u32 2147483647, %v10
  %v19 = vand.u32 2147483647, %v11
  %v20 = vsub.f32 0.0, %v16
  %v21 = vsub.f32 0.0, %v17
  %v22 = vsub.f32 0.0, %v18
  %v23 = vsub.f32 0.0, %v19
  %v24 = vmul.f32 %v20, 1.442695
  %v25 = vpow.pop %v24
  %v26 = vmul.f32 %v21, 1.442695
  %v27 = vpow.pop %v26
  %v28 = vmul.f32 %v22, 1.442695
  %v29 = vpow.pop %v28
  %v30 = vmul.f32 %v23, 1.442695
  %v31 = vpow.pop %v30
  %v32 = vadd.f32 %v25, 1.0
  %v33 = vadd.f32 %v27, 1.0
  %v34 = vadd.f32 %v29, 1.0
  %v35 = vadd.f32 %v31, 1.0
  %v36 = vlog2.pop %v32
  %v37 = vmul.f32 %v36, 0.6931472
  %v38 = vlog2.pop %v33
  %v39 = vmul.f32 %v38, 0.6931472
  %v40 = vlog2.pop %v34
  %v41 = vmul.f32 %v40, 0.6931472
  %v42 = vlog2.pop %v35
  %v43 = vmul.f32 %v42, 0.6931472
  %v44 = vadd.f32 %v12, %v37
  %v45 = vadd.f32 %v13, %v39
  %v46 = vadd.f32 %v14, %v41
  %v47 = vadd.f32 %v15, %v43
  %v48 = vtanh.pop %v44
  %v49 = vtanh.pop %v45
  %v50 = vtanh.pop %v46
  %v51 = vtanh.pop %v47
  %v52 = vmul.f32 %v8, %v48
  %v53 = vmul.f32 %v9, %v49
  %v54 = vmul.f32 %v10, %v50
  %v55 = vmul.f32 %v11, %v51
  %56 = vst [vmem:[%s1] sm:$0xff] %v52
  %57 = vst [vmem:[%s1 + $0x8] sm:$0xff] %v53
  %58 = vst [vmem:[%s1 + $0x10] sm:$0xff] %v54
  %59 = vst [vmem:[%s1 + $0x18] sm:$0xff] %v55
  // Predicated region
  $region6: #{mish.1} parent=0 // pred_check
    _
  $region7: #{mish.1} parent=0 // pred_check_branch
    %61 = sbr.rel (0) target = $region9
  $region8: #{mish.1} parent=0 // pred_region
    _
  $region9: #{mish.1} parent=0 // pred_fallthru
    _
  // Predicated region
  $region10: #{mish.1} parent=0 // pred_check
    _
  $region11: #{mish.1} parent=0 // pred_check_branch
    %63 = sbr.rel (0) target = $region13
  $region12: #{mish.1} parent=0 // pred_region
    _
  $region13: #{mish.1} parent=0 // pred_fallthru
    _

</llo_original>
